<compile_context>
chip_gen: v7x
topology: tpu7x:2x2x1
jax: 0.10.0
libtpu: 0.0.40
codegen_flags: <defaults>
</compile_context>

<pallas_src>
import jax
import jax.numpy as jnp
from jax.experimental import pallas as pl
from jax.experimental.pallas import tpu as pltpu


def _round_up(n, m):
    return ((n + m - 1) // m) * m


# --------------------------------------------------------------------------- kernel ---
def _vae_kernel(x_ref, we_ref, be_ref, wml_ref, bml_ref, wd_ref, bd_ref, eps_ref,
                recon_ref, musig_ref):
    lp = eps_ref.shape[-1]              # padded latent width (multiple of 128)
    mm_dtype = we_ref.dtype             # matmul operand dtype (bf16 by default)

    # ----- encoder: h = ReLU(x @ We + be); x arrives f32 at logical width, cast here -----
    h = jnp.dot(x_ref[...].astype(mm_dtype), we_ref[...],
                preferred_element_type=jnp.float32)
    h = jnp.maximum(h + be_ref[...], 0.0).astype(mm_dtype)

    # ----- fused __enc_mu | __enc_log_sigma: one MXU matmul, split at a 128-lane boundary -----
    ml = jnp.dot(h, wml_ref[...], preferred_element_type=jnp.float32) + bml_ref[...]
    mu = ml[:, :lp]
    sigma = jnp.exp(ml[:, lp:])

    # ----- reparameterization: z = mu + sigma * eps (zero pad lanes of eps keep z pad = 0) -----
    z = (mu + sigma * eps_ref[...]).astype(mm_dtype)

    # ----- decoder: recon = z @ Wd + bd -----
    recon = jnp.dot(z, wd_ref[...], preferred_element_type=jnp.float32) + bd_ref[...]

    recon_ref[...] = recon.astype(recon_ref.dtype)
    # packed [TB, 2*Lp] output: [ mu | sigma ] — one wide lane-aligned store stream
    musig_ref[:, :lp] = mu
    musig_ref[:, lp:] = sigma


# ---------------------------------------------------------------- one-time weight prep ---
def prepare_params(params, matmul_dtype=jnp.bfloat16):
    """One-time weight packing: pad to lane-dense widths, cast matmul operands to bf16,
    fuse the mu / log_sigma heads into a single [Ep, 2*Lp] operand. Call once and reuse —
    doing this per forward call re-writes every weight to HBM on every step."""
    Din, De = params["we"].shape
    Dl = params["wmu"].shape[1]
    Ep, Lp, Dp = _round_up(De, 128), _round_up(Dl, 128), _round_up(Din, 128)

    def pad2(a, r, c, dtype=None):
        a = jnp.pad(a, ((0, r - a.shape[0]), (0, c - a.shape[1])))
        return a if dtype is None else a.astype(dtype)

    return dict(
        dims=(Din, De, Dl, Ep, Lp, Dp),
        matmul_dtype=jnp.dtype(matmul_dtype),
        we=pad2(params["we"], Din, Ep, matmul_dtype),     # encoder input dim stays logical
        be=pad2(params["be"], 1, Ep),
        wml=jnp.concatenate([pad2(params["wmu"], Ep, Lp),
                             pad2(params["wls"], Ep, Lp)], axis=1).astype(matmul_dtype),
        bml=jnp.concatenate([pad2(params["bmu"], 1, Lp),
                             pad2(params["bls"], 1, Lp)], axis=1),
        wd=pad2(params["wd"], Lp, Dp, matmul_dtype),
        bd=pad2(params["bd"], 1, Dp),
    )


# ------------------------------------------------------------------------ tile choice ---
def _default_min_tiles():
    # Best-effort: on v7x (2 TensorCores / chip) keep the grid a multiple of 2 so the
    # "parallel" batch axis shards across both cores; on v5e/v6e a single step is best.
    try:
        n = int(getattr(jax.devices()[0], "num_cores", 1) or 1)
    except Exception:
        n = 1
    return min(max(n, 1), 2)


def _choose_tiling(B, batch_tile, min_tiles):
    """Pick (Bp, TB, n_tiles): 16-row granularity (bf16 packing), last tile nearly full."""
    Bp = _round_up(max(B, 1), 16)
    n_tiles = max(pl.cdiv(Bp, batch_tile), min_tiles)
    n_tiles = max(min(n_tiles, Bp // 16), 1)          # keep TB >= 16
    TB = _round_up(pl.cdiv(Bp, n_tiles), 16)
    n_tiles = pl.cdiv(Bp, TB)
    return TB * n_tiles, TB, n_tiles


# ----------------------------------------------------------------------------- forward ---
def vae_forward(x, prepared, eps, *, batch_tile=2048, min_tiles=None,
                recon_dtype=jnp.float32):
    """Fused VAE forward. x: [B, input_dim] f32, eps: [B, latent_dim] f32.
    Returns (reconstruction, z_mean, z_sigma); recon in `recon_dtype`, mu/sigma in f32."""
    B, Din = x.shape
    Din_p, De, Dl, Ep, Lp, Dp = prepared["dims"]
    assert Din == Din_p and eps.shape == (B, Dl)

    if min_tiles is None:
        min_tiles = _default_min_tiles()
    Bp, TB, n_tiles = _choose_tiling(B, batch_tile, min_tiles)

    # Batch-only pad for x (feature width stays logical — no 4x DMA inflation, bf16 cast
    # happens in-register); eps gets batch + lane pad in one jnp.pad (pad lanes are zero).
    x_p = jnp.pad(x, ((0, Bp - B), (0, 0)))
    eps_p = jnp.pad(eps, ((0, Bp - B), (0, Lp - Dl)))

    batch_spec = lambda cols: pl.BlockSpec((TB, cols), lambda i: (i, 0))
    resident = lambda r, c: pl.BlockSpec((r, c), lambda i: (0, 0))  # VMEM-resident across tiles

    in_specs = [
        batch_spec(Din),          # x (logical feature width; block dim == array dim)
        resident(Din, Ep),        # We
        resident(1, Ep),          # be
        resident(Ep, 2 * Lp),     # [wmu | wls]
        resident(1, 2 * Lp),      # [bmu | bls]
        resident(Lp, Dp),         # Wd
        resident(1, Dp),          # bd
        batch_spec(Lp),           # eps (lane-padded with zeros)
    ]
    out_specs = (batch_spec(Dp), batch_spec(2 * Lp))
    out_shapes = (
        jax.ShapeDtypeStruct((Bp, Dp), recon_dtype),       # reconstruction (padded)
        jax.ShapeDtypeStruct((Bp, 2 * Lp), jnp.float32),   # packed [ mu | sigma ] (padded)
    )

    itemsize = prepared["matmul_dtype"].itemsize
    bytes_in = (Bp * Din * 4 + Bp * Lp * 4
                + (Din * Ep + Ep * 2 * Lp + Lp * Dp) * itemsize
                + (Ep + 2 * Lp + Dp) * 4)
    bytes_out = Bp * Dp * jnp.dtype(recon_dtype).itemsize + Bp * 2 * Lp * 4
    cost = pl.CostEstimate(
        flops=2 * Bp * (Din * Ep + Ep * 2 * Lp + Lp * Dp),
        transcendentals=Bp * Lp,
        bytes_accessed=bytes_in + bytes_out,
    )

    recon_p, musig_p = pl.pallas_call(
        _vae_kernel,
        out_shape=out_shapes,
        grid=(n_tiles,),
        in_specs=in_specs,
        out_specs=out_specs,
        compiler_params=pltpu.CompilerParams(dimension_semantics=("parallel",)),
        cost_estimate=cost,
    )(x_p, prepared["we"], prepared["be"], prepared["wml"], prepared["bml"],
      prepared["wd"], prepared["bd"], eps_p)

    recon = recon_p[:B, :Din]
    mu = musig_p[:B, :Dl]                 # self.z_mean
    sigma = musig_p[:B, Lp:Lp + Dl]       # self.z_sigma
    return recon, mu, sigma


# -------------------------------------------------------------------- params / reference ---
def init_params(key, input_dim, encode_dim, latent_dim):
    """Deterministic parameter init. Weights stored as [in, out] (pre-transposed)."""
    ks = jax.random.split(key, 8)

    def lin(kw, kb, fan_in, fan_out):
        bound = 1.0 / jnp.sqrt(fan_in)
        w = jax.random.uniform(kw, (fan_in, fan_out), jnp.float32, -bound, bound)
        b = jax.random.uniform(kb, (1, fan_out), jnp.float32, -bound, bound)
        return w, b

    we, be = lin(ks[0], ks[1], input_dim, encode_dim)     # encoder Linear
    wmu, bmu = lin(ks[2], ks[3], encode_dim, latent_dim)  # __enc_mu
    wls, bls = lin(ks[4], ks[5], encode_dim, latent_dim)  # __enc_log_sigma
    wd, bd = lin(ks[6], ks[7], latent_dim, input_dim)     # decoder Linear
    return dict(we=we, be=be, wmu=wmu, bmu=bmu, wls=wls, bls=bls, wd=wd, bd=bd)


def vae_forward_ref(x, p, eps, matmul_dtype=jnp.bfloat16):
    """Pure-JAX reference with the same bf16-operand / f32-accumulate matmul recipe."""
    c = lambda a: a.astype(matmul_dtype)
    mm = lambda a, b: jnp.dot(c(a), c(b), preferred_element_type=jnp.float32)
    h = jnp.maximum(mm(x, p["we"]) + p["be"], 0.0)
    mu = mm(h, p["wmu"]) + p["bmu"]
    sigma = jnp.exp(mm(h, p["wls"]) + p["bls"])
    z = mu + sigma * eps
    return mm(z, p["wd"]) + p["bd"], mu, sigma


def _check(B, input_dim, encode_dim, latent_dim, seed, **fwd_kwargs):
    key = jax.random.PRNGKey(seed)
    k_x, k_p, k_eps = jax.random.split(key, 3)
    x = jax.random.normal(k_x, (B, input_dim), jnp.float32)
    params = init_params(k_p, input_dim, encode_dim, latent_dim)
    eps = jax.random.normal(k_eps, (B, latent_dim), jnp.float32)

    prepared = prepare_params(params)                     # one-time weight packing
    recon, z_mean, z_sigma = vae_forward(x, prepared, eps, **fwd_kwargs)
    jax.block_until_ready((recon, z_mean, z_sigma))

    r_ref, m_ref, s_ref = vae_forward_ref(x, params, eps)
    assert recon.shape == (B, input_dim) and z_mean.shape == (B, latent_dim)
    assert jnp.allclose(recon, r_ref, atol=1e-2, rtol=1e-2)
    assert jnp.allclose(z_mean, m_ref, atol=1e-2, rtol=1e-2)
    assert jnp.allclose(z_sigma, s_ref, atol=1e-2, rtol=1e-2)


if __name__ == "__main__":
    # small canonical shape (PRNGKey(0)), single grid step
    _check(B=8, input_dim=32, encode_dim=32, latent_dim=16, seed=0)
    # ragged batch with a forced multi-tile grid: exercises near-full balanced tiles,
    # 16-row batch padding, and the packed mu|sigma output across grid > 1.
    _check(B=300, input_dim=32, encode_dim=32, latent_dim=16, seed=0, batch_tile=128)
    print("KERNEL_OK")
</pallas_src>

<mosaic_0001>
module attributes {stable_mosaic.version = 11 : i64} {
  func.func @_vae_kernel(%arg0: i32, %arg1: memref<16x32xf32, #tpu.memory_space<vmem>>, %arg2: memref<32x128xbf16, #tpu.memory_space<vmem>>, %arg3: memref<1x128xf32, #tpu.memory_space<vmem>>, %arg4: memref<128x256xbf16, #tpu.memory_space<vmem>>, %arg5: memref<1x256xf32, #tpu.memory_space<vmem>>, %arg6: memref<128x128xbf16, #tpu.memory_space<vmem>>, %arg7: memref<1x128xf32, #tpu.memory_space<vmem>>, %arg8: memref<16x128xf32, #tpu.memory_space<vmem>>, %arg9: memref<16x128xf32, #tpu.memory_space<vmem>>, %arg10: memref<16x256xf32, #tpu.memory_space<vmem>>) attributes {dimension_semantics = [#tpu.dimension_semantics<parallel>], iteration_bounds = array<i64: 1>, scalar_prefetch = 0 : i64, scratch_operands = 0 : i64, tpu.core_type = #tpu.core_type<tc>, window_params = [{transform_indices = @transform_0, window_bounds = array<i64: 16, 32>}, {pipeline_mode = #tpu.pipeline_mode<synchronous>, transform_indices = @transform_1, window_bounds = array<i64: 32, 128>}, {pipeline_mode = #tpu.pipeline_mode<synchronous>, transform_indices = @transform_2, window_bounds = array<i64: 1, 128>}, {pipeline_mode = #tpu.pipeline_mode<synchronous>, transform_indices = @transform_3, window_bounds = array<i64: 128, 256>}, {pipeline_mode = #tpu.pipeline_mode<synchronous>, transform_indices = @transform_4, window_bounds = array<i64: 1, 256>}, {pipeline_mode = #tpu.pipeline_mode<synchronous>, transform_indices = @transform_5, window_bounds = array<i64: 128, 128>}, {pipeline_mode = #tpu.pipeline_mode<synchronous>, transform_indices = @transform_6, window_bounds = array<i64: 1, 128>}, {transform_indices = @transform_7, window_bounds = array<i64: 16, 128>}, {transform_indices = @transform_8, window_bounds = array<i64: 16, 128>}, {transform_indices = @transform_9, window_bounds = array<i64: 16, 256>}]} {
    %c0 = arith.constant 0 : index
    %c0_0 = arith.constant 0 : index
    %0 = vector.load %arg1[%c0, %c0_0] : memref<16x32xf32, #tpu.memory_space<vmem>>, vector<16x32xf32>
    %1 = arith.truncf %0 : vector<16x32xf32> to vector<16x32xbf16>
    %c0_1 = arith.constant 0 : index
    %c0_2 = arith.constant 0 : index
    %2 = vector.load %arg2[%c0_1, %c0_2] : memref<32x128xbf16, #tpu.memory_space<vmem>>, vector<32x128xbf16>
    %cst = arith.constant dense<0.000000e+00> : vector<16x128xf32>
    %3 = tpu.matmul %1, %2, %cst {dimension_numbers = #tpu.dot_dimension_numbers<[1], [0], [0], [1], [0, 0, 1, 1], [], []>} : vector<16x32xbf16>, vector<32x128xbf16>, vector<16x128xf32> -> vector<16x128xf32>
    %c0_3 = arith.constant 0 : index
    %c0_4 = arith.constant 0 : index
    %4 = vector.load %arg3[%c0_3, %c0_4] : memref<1x128xf32, #tpu.memory_space<vmem>>, vector<1x128xf32>
    %5 = vector.broadcast %4 : vector<1x128xf32> to vector<16x128xf32>
    %6 = arith.addf %3, %5 : vector<16x128xf32>
    %cst_5 = arith.constant 0.000000e+00 : f32
    %7 = vector.broadcast %cst_5 : f32 to vector<16x128xf32>
    %8 = arith.maximumf %6, %7 : vector<16x128xf32>
    %9 = arith.truncf %8 : vector<16x128xf32> to vector<16x128xbf16>
    %c0_6 = arith.constant 0 : index
    %c0_7 = arith.constant 0 : index
    %10 = vector.load %arg4[%c0_6, %c0_7] : memref<128x256xbf16, #tpu.memory_space<vmem>>, vector<128x256xbf16>
    %cst_8 = arith.constant dense<0.000000e+00> : vector<16x256xf32>
    %11 = tpu.matmul %9, %10, %cst_8 {dimension_numbers = #tpu.dot_dimension_numbers<[1], [0], [0], [1], [0, 0, 1, 1], [], []>} : vector<16x128xbf16>, vector<128x256xbf16>, vector<16x256xf32> -> vector<16x256xf32>
    %c0_9 = arith.constant 0 : index
    %c0_10 = arith.constant 0 : index
    %12 = vector.load %arg5[%c0_9, %c0_10] : memref<1x256xf32, #tpu.memory_space<vmem>>, vector<1x256xf32>
    %13 = vector.broadcast %12 : vector<1x256xf32> to vector<16x256xf32>
    %14 = arith.addf %11, %13 : vector<16x256xf32>
    %15 = vector.extract_strided_slice %14 {offsets = [0, 0], sizes = [16, 128], strides = [1, 1]} : vector<16x256xf32> to vector<16x128xf32>
    %16 = vector.extract_strided_slice %14 {offsets = [0, 128], sizes = [16, 128], strides = [1, 1]} : vector<16x256xf32> to vector<16x128xf32>
    %17 = math.exp %16 : vector<16x128xf32>
    %c0_11 = arith.constant 0 : index
    %c0_12 = arith.constant 0 : index
    %18 = vector.load %arg8[%c0_11, %c0_12] : memref<16x128xf32, #tpu.memory_space<vmem>>, vector<16x128xf32>
    %19 = arith.mulf %17, %18 : vector<16x128xf32>
    %20 = arith.addf %15, %19 : vector<16x128xf32>
    %21 = arith.truncf %20 : vector<16x128xf32> to vector<16x128xbf16>
    %c0_13 = arith.constant 0 : index
    %c0_14 = arith.constant 0 : index
    %22 = vector.load %arg6[%c0_13, %c0_14] : memref<128x128xbf16, #tpu.memory_space<vmem>>, vector<128x128xbf16>
    %cst_15 = arith.constant dense<0.000000e+00> : vector<16x128xf32>
    %23 = tpu.matmul %21, %22, %cst_15 {dimension_numbers = #tpu.dot_dimension_numbers<[1], [0], [0], [1], [0, 0, 1, 1], [], []>} : vector<16x128xbf16>, vector<128x128xbf16>, vector<16x128xf32> -> vector<16x128xf32>
    %c0_16 = arith.constant 0 : index
    %c0_17 = arith.constant 0 : index
    %24 = vector.load %arg7[%c0_16, %c0_17] : memref<1x128xf32, #tpu.memory_space<vmem>>, vector<1x128xf32>
    %25 = vector.broadcast %24 : vector<1x128xf32> to vector<16x128xf32>
    %26 = arith.addf %23, %25 : vector<16x128xf32>
    %c0_18 = arith.constant 0 : index
    %c0_19 = arith.constant 0 : index
    %27 = vector.load %arg9[%c0_18, %c0_19] : memref<16x128xf32, #tpu.memory_space<vmem>>, vector<16x128xf32>
    tpu.vector_store %arg9[%c0_18, %c0_19], %26 {strides = array<i32>} : memref<16x128xf32, #tpu.memory_space<vmem>>, vector<16x128xf32>,
    %c0_20 = arith.constant 0 : index
    %c0_21 = arith.constant 0 : index
    %28 = vector.load %arg10[%c0_20, %c0_21] : memref<16x256xf32, #tpu.memory_space<vmem>>, vector<16x128xf32>
    tpu.vector_store %arg10[%c0_20, %c0_21], %15 {strides = array<i32>} : memref<16x256xf32, #tpu.memory_space<vmem>>, vector<16x128xf32>,
    %c0_22 = arith.constant 0 : index
    %c128 = arith.constant 128 : index
    %29 = vector.load %arg10[%c0_22, %c128] : memref<16x256xf32, #tpu.memory_space<vmem>>, vector<16x128xf32>
    tpu.vector_store %arg10[%c0_22, %c128], %17 {strides = array<i32>} : memref<16x256xf32, #tpu.memory_space<vmem>>, vector<16x128xf32>,
    return
  }
  func.func @transform_0(%arg0: i32) -> (i32, i32) {
    %c0_i32 = arith.constant 0 : i32
    %c0_i32_0 = arith.constant 0 : i32
    return %arg0, %c0_i32 : i32, i32
  }
  func.func @transform_1(%arg0: i32) -> (i32, i32) {
    %c0_i32 = arith.constant 0 : i32
    %c0_i32_0 = arith.constant 0 : i32
    %c0_i32_1 = arith.constant 0 : i32
    return %c0_i32, %c0_i32_0 : i32, i32
  }
  func.func @transform_2(%arg0: i32) -> (i32, i32) {
    %c0_i32 = arith.constant 0 : i32
    %c0_i32_0 = arith.constant 0 : i32
    %c0_i32_1 = arith.constant 0 : i32
    return %c0_i32, %c0_i32_0 : i32, i32
  }
  func.func @transform_3(%arg0: i32) -> (i32, i32) {
    %c0_i32 = arith.constant 0 : i32
    %c0_i32_0 = arith.constant 0 : i32
    %c0_i32_1 = arith.constant 0 : i32
    return %c0_i32, %c0_i32_0 : i32, i32
  }
  func.func @transform_4(%arg0: i32) -> (i32, i32) {
    %c0_i32 = arith.constant 0 : i32
    %c0_i32_0 = arith.constant 0 : i32
    %c0_i32_1 = arith.constant 0 : i32
    return %c0_i32, %c0_i32_0 : i32, i32
  }
  func.func @transform_5(%arg0: i32) -> (i32, i32) {
    %c0_i32 = arith.constant 0 : i32
    %c0_i32_0 = arith.constant 0 : i32
    %c0_i32_1 = arith.constant 0 : i32
    return %c0_i32, %c0_i32_0 : i32, i32
  }
  func.func @transform_6(%arg0: i32) -> (i32, i32) {
    %c0_i32 = arith.constant 0 : i32
    %c0_i32_0 = arith.constant 0 : i32
    %c0_i32_1 = arith.constant 0 : i32
    return %c0_i32, %c0_i32_0 : i32, i32
  }
  func.func @transform_7(%arg0: i32) -> (i32, i32) {
    %c0_i32 = arith.constant 0 : i32
    %c0_i32_0 = arith.constant 0 : i32
    return %arg0, %c0_i32 : i32, i32
  }
  func.func @transform_8(%arg0: i32) -> (i32, i32) {
    %c0_i32 = arith.constant 0 : i32
    %c0_i32_0 = arith.constant 0 : i32
    return %arg0, %c0_i32 : i32, i32
  }
  func.func @transform_9(%arg0: i32) -> (i32, i32) {
    %c0_i32 = arith.constant 0 : i32
    %c0_i32_0 = arith.constant 0 : i32
    return %arg0, %c0_i32 : i32, i32
  }
}

</mosaic_0001>

<llo_original>
// kernel: tpu_custom_call.1
$region0: #{tpu_custom_call.1}
  #allocation0 [shape = 'u32[]', space=smem, size = 0x4, offset = 0x4, fixed_abs, tag = 'smem constant byte address 0x4 - core index']
  #allocation1 [shape = 'u32[144,128]{1,0:T(1,128)}', space=vmem, size = 0x12000, scoped, tag = 'internal scratch']
  %s0 = inlined_call_operand.hbm [shape: f32[16,32], index: 0, kind: input, shape index: {}]
  %s1 = inlined_call_operand.hbm [shape: bf16[32,128], index: 1, kind: input, shape index: {}]
  %s2 = inlined_call_operand.vmem [shape: f32[1,128], index: 2, kind: input, shape index: {}]
  %s3 = inlined_call_operand.hbm [shape: bf16[128,256], index: 3, kind: input, shape index: {}]
  %s4 = inlined_call_operand.vmem [shape: f32[1,256], index: 4, kind: input, shape index: {}]
  %s5 = inlined_call_operand.hbm [shape: bf16[128,128], index: 5, kind: input, shape index: {}]
  %s6 = inlined_call_operand.vmem [shape: f32[1,128], index: 6, kind: input, shape index: {}]
  %s7 = inlined_call_operand.vmem [shape: f32[16,128], index: 7, kind: input, shape index: {}]
  %s8 = inlined_call_operand.hbm [shape: f32[16,128], index: 8, kind: output, shape index: {0}]
  %s9 = inlined_call_operand.hbm [shape: f32[16,256], index: 9, kind: output, shape index: {1}]
  %10 = xla_tuple %s8, %s9
  %s11 = sld [smem:[#allocation0]]
  $region66: #{tpu_custom_call.1} parent=0
    _
  %s13 = ssub.s32 1, %s11
  %s14 = scalar_select 0, %s13, %s11
  $region1: #{tpu_custom_call.1} parent=0
    #allocation2 [shape = 'u8[8192]{0}', space=vmem, size = 0x2000, scoped, tag = 'input window, operand 0, single buffered']
    #allocation3 [shape = 's32[1]{0}', space=sflag, size = 0x4, scoped, tag = 'scoped memory for tpu_custom_call.1']
    #allocation4 [shape = 's32[1]{0}', space=sflag, size = 0x4, scoped, tag = 'scoped memory for tpu_custom_call.1']
    #allocation5 [shape = 'u8[8192]{0}', space=vmem, size = 0x2000, scoped, tag = 'input window, operand 1, single buffered']
    #allocation6 [shape = 's32[1]{0}', space=sflag, size = 0x4, scoped, tag = 'scoped memory for tpu_custom_call.1']
    #allocation7 [shape = 'u8[65536]{0}', space=vmem, size = 0x10000, scoped, tag = 'input window, operand 3, single buffered']
    #allocation8 [shape = 'u8[32768]{0}', space=vmem, size = 0x8000, scoped, tag = 'input window, operand 5, single buffered']
    #allocation9 [shape = 's32[1]{0}', space=sflag, size = 0x4, scoped, tag = 'scoped memory for tpu_custom_call.1']
    #allocation10 [shape = 'u8[8192]{0}', space=vmem, size = 0x2000, scoped, tag = 'output window, operand 0, single buffered']
    #allocation11 [shape = 'u8[16384]{0}', space=vmem, size = 0x4000, scoped, tag = 'output window, operand 1, single buffered']
    #allocation12 [shape = 's32[1]{0}', space=sflag, size = 0x4, scoped, tag = 'scoped memory for tpu_custom_call.1']
    %15 = vsyncpa [#allocation3], 0
    %16 = vsyncpa [#allocation6], 0
    %17 = vsyncpa [#allocation9], 0
    %18 = vsyncpa [#allocation4], 0
    %19 = vsyncpa [#allocation12], 0
    // Predicated region
    $region2: #{tpu_custom_call.1} parent=1 // pred_check
      _
    $region3: #{tpu_custom_call.1} parent=1 // pred_check_branch
      %21 = sbr.rel (0) target = $region5
    $region4: #{tpu_custom_call.1} parent=1 // pred_region
      %s23 = ssub.s32 256, 256
      %24 = vsyncadd [#allocation3], %s23
      %s25 = sshll.u32 [#allocation2], 4
      %s26 = int_to_ptr.vmem [resolvable:$true] %s25
      %31 = dma.hbm_to_vmem [thread:$0]  %s0, 256, %s26, [#allocation3], 128, 128, 8
    $region5: #{tpu_custom_call.1} parent=1 // pred_fallthru
      _
    // Predicated region
    $region6: #{tpu_custom_call.1} parent=1 // pred_check
      _
    $region7: #{tpu_custom_call.1} parent=1 // pred_check_branch
      %33 = sbr.rel (0) target = $region9
    $region8: #{tpu_custom_call.1} parent=1 // pred_region
      %s35 = ssub.s32 256, 256
      %36 = vsyncadd [#allocation6], %s35
      %s37 = sshll.u32 [#allocation5], 4
      %s38 = int_to_ptr.vmem [resolvable:$true] %s37
      %43 = dma.hbm_to_vmem [thread:$0]  %s1, 256, %s38, [#allocation6], 64, 64, 4
    $region9: #{tpu_custom_call.1} parent=1 // pred_fallthru
      _
    // Predicated region
    $region10: #{tpu_custom_call.1} parent=1 // pred_check
      _
    $region11: #{tpu_custom_call.1} parent=1 // pred_check_branch
      %45 = sbr.rel (0) target = $region13
    $region12: #{tpu_custom_call.1} parent=1 // pred_region
      _
    $region13: #{tpu_custom_call.1} parent=1 // pred_fallthru
      _
    // Predicated region
    $region14: #{tpu_custom_call.1} parent=1 // pred_check
      _
    $region15: #{tpu_custom_call.1} parent=1 // pred_check_branch
      %47 = sbr.rel (0) target = $region17
    $region16: #{tpu_custom_call.1} parent=1 // pred_region
      %s49 = ssub.s32 2048, 2048
      %50 = vsyncadd [#allocation6], %s49
      %s51 = sshll.u32 [#allocation7], 4
      %s52 = int_to_ptr.vmem [resolvable:$true] %s51
      %57 = dma.hbm_to_vmem [thread:$0]  %s3, 2048, %s52, [#allocation6], 128, 128, 8
    $region17: #{tpu_custom_call.1} parent=1 // pred_fallthru
      _
    // Predicated region
    $region18: #{tpu_custom_call.1} parent=1 // pred_check
      _
    $region19: #{tpu_custom_call.1} parent=1 // pred_check_branch
      %59 = sbr.rel (0) target = $region21
    $region20: #{tpu_custom_call.1} parent=1 // pred_region
      _
    $region21: #{tpu_custom_call.1} parent=1 // pred_fallthru
      _
    // Predicated region
    $region22: #{tpu_custom_call.1} parent=1 // pred_check
      _
    $region23: #{tpu_custom_call.1} parent=1 // pred_check_branch
      %61 = sbr.rel (0) target = $region25
    $region24: #{tpu_custom_call.1} parent=1 // pred_region
      %s63 = ssub.s32 1024, 1024
      %64 = vsyncadd [#allocation9], %s63
      %s65 = sshll.u32 [#allocation8], 4
      %s66 = int_to_ptr.vmem [resolvable:$true] %s65
      %71 = dma.hbm_to_vmem [thread:$0]  %s5, 1024, %s66, [#allocation9], 64, 64, 4
    $region25: #{tpu_custom_call.1} parent=1 // pred_fallthru
      _
    // Predicated region
    $region26: #{tpu_custom_call.1} parent=1 // pred_check
      _
    $region27: #{tpu_custom_call.1} parent=1 // pred_check_branch
      %73 = sbr.rel (0) target = $region29
    $region28: #{tpu_custom_call.1} parent=1 // pred_region
      _
    $region29: #{tpu_custom_call.1} parent=1 // pred_fallthru
      _
    // Predicated region
    $region30: #{tpu_custom_call.1} parent=1 // pred_check
      _
    $region31: #{tpu_custom_call.1} parent=1 // pred_check_branch
      %75 = sbr.rel (0) target = $region33
    $region32: #{tpu_custom_call.1} parent=1 // pred_region
      _
    $region33: #{tpu_custom_call.1} parent=1 // pred_fallthru
      _
    // Predicated region
    $region34: #{tpu_custom_call.1} parent=1 // pred_check
      _
    $region35: #{tpu_custom_call.1} parent=1 // pred_check_branch
      %77 = sbr.rel (0) target = $region37
    $region36: #{tpu_custom_call.1} parent=1 // pred_region
      %78 = dma.done [#allocation3], 256
    $region37: #{tpu_custom_call.1} parent=1 // pred_fallthru
      _
    // Predicated region
    $region38: #{tpu_custom_call.1} parent=1 // pred_check
      _
    $region39: #{tpu_custom_call.1} parent=1 // pred_check_branch
      %80 = sbr.rel (0) target = $region41
    $region40: #{tpu_custom_call.1} parent=1 // pred_region
      %81 = dma.done [#allocation6], 256
    $region41: #{tpu_custom_call.1} parent=1 // pred_fallthru
      _
    // Predicated region
    $region42: #{tpu_custom_call.1} parent=1 // pred_check
      _
    $region43: #{tpu_custom_call.1} parent=1 // pred_check_branch
      %83 = sbr.rel (0) target = $region45
    $region44: #{tpu_custom_call.1} parent=1 // pred_region
      %84 = dma.done [#allocation6], 2048
    $region45: #{tpu_custom_call.1} parent=1 // pred_fallthru
      _
    // Predicated region
    $region46: #{tpu_custom_call.1} parent=1 // pred_check
      _
    $region47: #{tpu_custom_call.1} parent=1 // pred_check_branch
      %86 = sbr.rel (0) target = $region49
    $region48: #{tpu_custom_call.1} parent=1 // pred_region
      %87 = dma.done [#allocation9], 1024
    $region49: #{tpu_custom_call.1} parent=1 // pred_fallthru
      _
    %v89 = vld [vmem:[#allocation2] sm:$0xff]
    %v90 = vld [vmem:[#allocation2 + $0x8] sm:$0xff]
    %v91 = vpack.c.bf16 %v90, %v89
    %v92 = vld [vmem:[#allocation5] sm:$0xf]
    %v93 = vld [vmem:[#allocation5 + $0x4] sm:$0xf]
    %v94 = vld [vmem:[#allocation5 + $0x8] sm:$0xf]
    %v95 = vld [vmem:[#allocation5 + $0xc] sm:$0xf]
    %v96 = vld [vmem:[%s2] sm:$0x1]
    %v98 = vlaneseq
    %v99 = vshrl.u32 %v98, 7
    %v100 = vsub.s32 0, %v99
    %v101 = vrot.slane %v96, %v100
    %v107 = vunpack.c.l.b16 %v92
    %v108 = vunpack.c.l.b16 %v93
    %v109 = vunpack.c.l.b16 %v94
    %v110 = vunpack.c.l.b16 %v95
    %v111 = vpack.c.b16 %v108, %v107
    %v112 = vpack.c.b16 %v110, %v109
    %vm115 = vcmask 261120
    %v117 = vsel %vm115, %v91, 0
    %119 = vmatprep.subr.bf16.mxu0 0
    %120 = vmatpush1.bf16.msra.mxu0 %v111
    %121 = vmatprep.subr.bf16.mxu0 0
    %122 = vmatpush1.bf16.msra.mxu0 %v112
    %123 = vmatprep.subr.bf16.mxu0 0
    %124 = vmatpush1.bf16.msra.mxu0 0
    %125 = vmatprep.subr.bf16.mxu0 0
    %126 = vmatpush1.bf16.msra.mxu0 0
    %127 = vmatprep.subr.bf16.mxu0 0
    %128 = vmatpush1.bf16.msra.mxu0 0
    %129 = vmatprep.subr.bf16.mxu0 0
    %130 = vmatpush1.bf16.msra.mxu0 0
    %131 = vmatprep.subr.bf16.mxu0 0
    %132 = vmatpush1.bf16.msra.mxu0 0
    %133 = vmatprep.subr.bf16.mxu0 0
    %134 = vmatpush1.bf16.msra.mxu0 0
    %135 = vmatprep.subr.bf16.mxu0 0
    %136 = vmatpush1.bf16.msra.mxu0 0
    %137 = vmatprep.subr.bf16.mxu0 0
    %138 = vmatpush1.bf16.msra.mxu0 0
    %139 = vmatprep.subr.bf16.mxu0 0
    %140 = vmatpush1.bf16.msra.mxu0 0
    %141 = vmatprep.subr.bf16.mxu0 0
    %142 = vmatpush1.bf16.msra.mxu0 0
    %143 = vmatprep.subr.bf16.mxu0 0
    %144 = vmatpush1.bf16.msra.mxu0 0
    %145 = vmatprep.subr.bf16.mxu0 0
    %146 = vmatpush1.bf16.msra.mxu0 0
    %147 = vmatprep.subr.bf16.mxu0 0
    %148 = vmatpush1.bf16.msra.mxu0 0
    %149 = vmatprep.subr.bf16.mxu0 0
    %150 = vmatpush1.bf16.msra.mxu0 0
    %151 = vmatprep.mubr.bf16.mxu0 0
    %152 = vmatmul.mubr.bf16.gmra.mrb[0].mxu0 %v117
    %v153 = vpop.f32.mrb[0].mxu0
    %v154 = vadd.f32 %v101, %v153
    %v155 = vpop.f32.mrb[0].mxu0
    %v156 = vpop.f32.mrb[0].mxu0
    %v157 = vadd.f32 %v101, %v156
    %v158 = vpop.f32.mrb[0].mxu0
    %159 = vdwg.mxu0
    %v160 = vmax.f32 %v154, 0.0
    %v161 = vmax.f32 %v157, 0.0
    %v162 = vpack.c.bf16 %v161, %v160
    %v163 = vld [vmem:[#allocation7] sm:$0xff]
    %v164 = vld [vmem:[#allocation7 + $0x8] sm:$0xff]
    %v165 = vld [vmem:[#allocation7 + $0x10] sm:$0xff]
    %v166 = vld [vmem:[#allocation7 + $0x18] sm:$0xff]
    %v167 = vld [vmem:[#allocation7 + $0x20] sm:$0xff]
    %v168 = vld [vmem:[#allocation7 + $0x28] sm:$0xff]
    %v169 = vld [vmem:[#allocation7 + $0x30] sm:$0xff]
    %v170 = vld [vmem:[#allocation7 + $0x38] sm:$0xff]
    %v171 = vld [vmem:[#allocation7 + $0x40] sm:$0xff]
    %v172 = vld [vmem:[#allocation7 + $0x48] sm:$0xff]
    %v173 = vld [vmem:[#allocation7 + $0x50] sm:$0xff]
    %v174 = vld [vmem:[#allocation7 + $0x58] sm:$0xff]
    %v175 = vld [vmem:[#allocation7 + $0x60] sm:$0xff]
    %v176 = vld [vmem:[#allocation7 + $0x68] sm:$0xff]
    %v177 = vld [vmem:[#allocation7 + $0x70] sm:$0xff]
    %v178 = vld [vmem:[#allocation7 + $0x78] sm:$0xff]
    %v179 = vld [vmem:[%s4] sm:$0x3]
    %v181 = vlaneseq
    %v182 = vshrl.u32 %v181, 7
    %v183 = vsub.s32 0, %v182
    %v184 = vrot.slane %v179, %v183
    %v185 = vlaneseq
    %v186 = vshrl.u32 %v185, 7
    %v187 = vsub.s32 1, %v186
    %v188 = vrot.slane %v179, %v187
    %v207 = vunpack.c.l.b16 %v163
    %v208 = vunpack.c.h.b16 %v163
    %v209 = vunpack.c.l.b16 %v164
    %v210 = vunpack.c.h.b16 %v164
    %v211 = vunpack.c.l.b16 %v165
    %v212 = vunpack.c.h.b16 %v165
    %v213 = vunpack.c.l.b16 %v166
    %v214 = vunpack.c.h.b16 %v166
    %v215 = vunpack.c.l.b16 %v167
    %v216 = vunpack.c.h.b16 %v167
    %v217 = vunpack.c.l.b16 %v168
    %v218 = vunpack.c.h.b16 %v168
    %v219 = vunpack.c.l.b16 %v169
    %v220 = vunpack.c.h.b16 %v169
    %v221 = vunpack.c.l.b16 %v170
    %v222 = vunpack.c.h.b16 %v170
    %v223 = vunpack.c.l.b16 %v171
    %v224 = vunpack.c.h.b16 %v171
    %v225 = vunpack.c.l.b16 %v172
    %v226 = vunpack.c.h.b16 %v172
    %v227 = vunpack.c.l.b16 %v173
    %v228 = vunpack.c.h.b16 %v173
    %v229 = vunpack.c.l.b16 %v174
    %v230 = vunpack.c.h.b16 %v174
    %v231 = vunpack.c.l.b16 %v175
    %v232 = vunpack.c.h.b16 %v175
    %v233 = vunpack.c.l.b16 %v176
    %v234 = vunpack.c.h.b16 %v176
    %v235 = vunpack.c.l.b16 %v177
    %v236 = vunpack.c.h.b16 %v177
    %v237 = vunpack.c.l.b16 %v178
    %v238 = vunpack.c.h.b16 %v178
    %v239 = vpack.c.b16 %v209, %v207
    %v240 = vpack.c.b16 %v210, %v208
    %v241 = vpack.c.b16 %v213, %v211
    %v242 = vpack.c.b16 %v214, %v212
    %v243 = vpack.c.b16 %v217, %v215
    %v244 = vpack.c.b16 %v218, %v216
    %v245 = vpack.c.b16 %v221, %v219
    %v246 = vpack.c.b16 %v222, %v220
    %v247 = vpack.c.b16 %v225, %v223
    %v248 = vpack.c.b16 %v226, %v224
    %v249 = vpack.c.b16 %v229, %v227
    %v250 = vpack.c.b16 %v230, %v228
    %v251 = vpack.c.b16 %v233, %v231
    %v252 = vpack.c.b16 %v234, %v232
    %v253 = vpack.c.b16 %v237, %v235
    %v254 = vpack.c.b16 %v238, %v236
    %271 = vmatprep.subr.bf16.mxu0 %v240
    %272 = vmatpush1.bf16.msra.mxu0 %v239
    %273 = vmatprep.subr.bf16.mxu0 %v242
    %274 = vmatpush1.bf16.msra.mxu0 %v241
    %275 = vmatprep.subr.bf16.mxu0 %v244
    %276 = vmatpush1.bf16.msra.mxu0 %v243
    %277 = vmatprep.subr.bf16.mxu0 %v246
    %278 = vmatpush1.bf16.msra.mxu0 %v245
    %279 = vmatprep.subr.bf16.mxu0 %v248
    %280 = vmatpush1.bf16.msra.mxu0 %v247
    %281 = vmatprep.subr.bf16.mxu0 %v250
    %282 = vmatpush1.bf16.msra.mxu0 %v249
    %283 = vmatprep.subr.bf16.mxu0 %v252
    %284 = vmatpush1.bf16.msra.mxu0 %v251
    %285 = vmatprep.subr.bf16.mxu0 %v254
    %286 = vmatpush1.bf16.msra.mxu0 %v253
    %287 = vmatprep.subr.bf16.mxu0 0
    %288 = vmatpush1.bf16.msra.mxu0 0
    %289 = vmatprep.subr.bf16.mxu0 0
    %290 = vmatpush1.bf16.msra.mxu0 0
    %291 = vmatprep.subr.bf16.mxu0 0
    %292 = vmatpush1.bf16.msra.mxu0 0
    %293 = vmatprep.subr.bf16.mxu0 0
    %294 = vmatpush1.bf16.msra.mxu0 0
    %295 = vmatprep.subr.bf16.mxu0 0
    %296 = vmatpush1.bf16.msra.mxu0 0
    %297 = vmatprep.subr.bf16.mxu0 0
    %298 = vmatpush1.bf16.msra.mxu0 0
    %299 = vmatprep.subr.bf16.mxu0 0
    %300 = vmatpush1.bf16.msra.mxu0 0
    %301 = vmatprep.subr.bf16.mxu0 0
    %302 = vmatpush1.bf16.msra.mxu0 0
    %303 = vmatprep.mubr.bf16.mxu0 0
    %304 = vmatmul.mubr.bf16.gmra.mrb[0].mxu0 %v162
    %v305 = vpop.f32.mrb[0].mxu0
    %v306 = vadd.f32 %v184, %v305
    %v307 = vpop.f32.mrb[0].mxu0
    %v308 = vadd.f32 %v188, %v307
    %v309 = vpop.f32.mrb[0].mxu0
    %v310 = vadd.f32 %v184, %v309
    %v311 = vpop.f32.mrb[0].mxu0
    %v312 = vadd.f32 %v188, %v311
    %313 = vdwg.mxu0
    %v314 = vmul.f32 %v308, 1.442695
    %v315 = vpow.pop %v314
    %v316 = vmul.f32 %v312, 1.442695
    %v317 = vpow.pop %v316
    %v318 = vld [vmem:[%s7] sm:$0xff]
    %v319 = vld [vmem:[%s7 + $0x8] sm:$0xff]
    %v320 = vmul.f32 %v315, %v318
    %v321 = vmul.f32 %v317, %v319
    %v322 = vadd.f32 %v306, %v320
    %v323 = vadd.f32 %v310, %v321
    %v324 = vpack.c.bf16 %v323, %v322
    %v325 = vld [vmem:[#allocation8] sm:$0xf]
    %v326 = vld [vmem:[#allocation8 + $0x4] sm:$0xf]
    %v327 = vld [vmem:[#allocation8 + $0x8] sm:$0xf]
    %v328 = vld [vmem:[#allocation8 + $0xc] sm:$0xf]
    %v329 = vld [vmem:[#allocation8 + $0x10] sm:$0xf]
    %v330 = vld [vmem:[#allocation8 + $0x14] sm:$0xf]
    %v331 = vld [vmem:[#allocation8 + $0x18] sm:$0xf]
    %v332 = vld [vmem:[#allocation8 + $0x1c] sm:$0xf]
    %v333 = vld [vmem:[#allocation8 + $0x20] sm:$0xf]
    %v334 = vld [vmem:[#allocation8 + $0x24] sm:$0xf]
    %v335 = vld [vmem:[#allocation8 + $0x28] sm:$0xf]
    %v336 = vld [vmem:[#allocation8 + $0x2c] sm:$0xf]
    %v337 = vld [vmem:[#allocation8 + $0x30] sm:$0xf]
    %v338 = vld [vmem:[#allocation8 + $0x34] sm:$0xf]
    %v339 = vld [vmem:[#allocation8 + $0x38] sm:$0xf]
    %v340 = vld [vmem:[#allocation8 + $0x3c] sm:$0xf]
    %v341 = vld [vmem:[%s6] sm:$0x1]
    %v343 = vlaneseq
    %v344 = vshrl.u32 %v343, 7
    %v345 = vsub.s32 0, %v344
    %v346 = vrot.slane %v341, %v345
    %v364 = vunpack.c.l.b16 %v325
    %v365 = vunpack.c.l.b16 %v326
    %v366 = vunpack.c.l.b16 %v327
    %v367 = vunpack.c.l.b16 %v328
    %v368 = vunpack.c.l.b16 %v329
    %v369 = vunpack.c.l.b16 %v330
    %v370 = vunpack.c.l.b16 %v331
    %v371 = vunpack.c.l.b16 %v332
    %v372 = vunpack.c.l.b16 %v333
    %v373 = vunpack.c.l.b16 %v334
    %v374 = vunpack.c.l.b16 %v335
    %v375 = vunpack.c.l.b16 %v336
    %v376 = vunpack.c.l.b16 %v337
    %v377 = vunpack.c.l.b16 %v338
    %v378 = vunpack.c.l.b16 %v339
    %v379 = vunpack.c.l.b16 %v340
    %v380 = vpack.c.b16 %v365, %v364
    %v381 = vpack.c.b16 %v367, %v366
    %v382 = vpack.c.b16 %v369, %v368
    %v383 = vpack.c.b16 %v371, %v370
    %v384 = vpack.c.b16 %v373, %v372
    %v385 = vpack.c.b16 %v375, %v374
    %v386 = vpack.c.b16 %v377, %v376
    %v387 = vpack.c.b16 %v379, %v378
    %396 = vmatprep.subr.bf16.mxu0 0
    %397 = vmatpush1.bf16.msra.mxu0 %v380
    %398 = vmatprep.subr.bf16.mxu0 0
    %399 = vmatpush1.bf16.msra.mxu0 %v381
    %400 = vmatprep.subr.bf16.mxu0 0
    %401 = vmatpush1.bf16.msra.mxu0 %v382
    %402 = vmatprep.subr.bf16.mxu0 0
    %403 = vmatpush1.bf16.msra.mxu0 %v383
    %404 = vmatprep.subr.bf16.mxu0 0
    %405 = vmatpush1.bf16.msra.mxu0 %v384
    %406 = vmatprep.subr.bf16.mxu0 0
    %407 = vmatpush1.bf16.msra.mxu0 %v385
    %408 = vmatprep.subr.bf16.mxu0 0
    %409 = vmatpush1.bf16.msra.mxu0 %v386
    %410 = vmatprep.subr.bf16.mxu0 0
    %411 = vmatpush1.bf16.msra.mxu0 %v387
    %412 = vmatprep.subr.bf16.mxu0 0
    %413 = vmatpush1.bf16.msra.mxu0 0
    %414 = vmatprep.subr.bf16.mxu0 0
    %415 = vmatpush1.bf16.msra.mxu0 0
    %416 = vmatprep.subr.bf16.mxu0 0
    %417 = vmatpush1.bf16.msra.mxu0 0
    %418 = vmatprep.subr.bf16.mxu0 0
    %419 = vmatpush1.bf16.msra.mxu0 0
    %420 = vmatprep.subr.bf16.mxu0 0
    %421 = vmatpush1.bf16.msra.mxu0 0
    %422 = vmatprep.subr.bf16.mxu0 0
    %423 = vmatpush1.bf16.msra.mxu0 0
    %424 = vmatprep.subr.bf16.mxu0 0
    %425 = vmatpush1.bf16.msra.mxu0 0
    %426 = vmatprep.subr.bf16.mxu0 0
    %427 = vmatpush1.bf16.msra.mxu0 0
    %428 = vmatprep.mubr.bf16.mxu0 0
    %429 = vmatmul.mubr.bf16.gmra.mrb[0].mxu0 %v324
    %v430 = vpop.f32.mrb[0].mxu0
    %v431 = vadd.f32 %v346, %v430
    %v432 = vpop.f32.mrb[0].mxu0
    %v433 = vpop.f32.mrb[0].mxu0
    %v434 = vadd.f32 %v346, %v433
    %v435 = vpop.f32.mrb[0].mxu0
    %436 = vdwg.mxu0
    %437 = vst [vmem:[#allocation10] sm:$0xff] %v431
    %438 = vst [vmem:[#allocation10 + $0x8] sm:$0xff] %v434
    %439 = vst [vmem:[#allocation11] sm:$0xff] %v306
    %440 = vst [vmem:[#allocation11 + $0x10] sm:$0xff] %v310
    %441 = vst [vmem:[#allocation11 + $0x8] sm:$0xff] %v315
    %442 = vst [vmem:[#allocation11 + $0x18] sm:$0xff] %v317
    // Predicated region
    $region50: #{tpu_custom_call.1} parent=1 // pred_check
      _
    $region51: #{tpu_custom_call.1} parent=1 // pred_check_branch
      %444 = sbr.rel (0) target = $region53
    $region52: #{tpu_custom_call.1} parent=1 // pred_region
      %s446 = ssub.s32 256, 256
      %447 = vsyncadd [#allocation4], %s446
      %s448 = sshll.u32 [#allocation10], 4
      %s449 = int_to_ptr.vmem [resolvable:$true] %s448
      %454 = dma.vmem_to_hbm [thread:$0]  %s449, 256, %s8, [#allocation4], 128, 128, 8
    $region53: #{tpu_custom_call.1} parent=1 // pred_fallthru
      _
    // Predicated region
    $region54: #{tpu_custom_call.1} parent=1 // pred_check
      _
    $region55: #{tpu_custom_call.1} parent=1 // pred_check_branch
      %456 = sbr.rel (0) target = $region57
    $region56: #{tpu_custom_call.1} parent=1 // pred_region
      %s458 = ssub.s32 512, 512
      %459 = vsyncadd [#allocation12], %s458
      %s460 = sshll.u32 [#allocation11], 4
      %s461 = int_to_ptr.vmem [resolvable:$true] %s460
      %466 = dma.vmem_to_hbm [thread:$0]  %s461, 512, %s9, [#allocation12], 256, 256, 16
    $region57: #{tpu_custom_call.1} parent=1 // pred_fallthru
      _
    // Predicated region
    $region58: #{tpu_custom_call.1} parent=1 // pred_check
      _
    $region59: #{tpu_custom_call.1} parent=1 // pred_check_branch
      %468 = sbr.rel (0) target = $region61
    $region60: #{tpu_custom_call.1} parent=1 // pred_region
      %469 = dma.done [#allocation4], 256
    $region61: #{tpu_custom_call.1} parent=1 // pred_fallthru
      _
    // Predicated region
    $region62: #{tpu_custom_call.1} parent=1 // pred_check
      _
    $region63: #{tpu_custom_call.1} parent=1 // pred_check_branch
      %471 = sbr.rel (0) target = $region65
    $region64: #{tpu_custom_call.1} parent=1 // pred_region
      %472 = dma.done [#allocation12], 512
    $region65: #{tpu_custom_call.1} parent=1 // pred_fallthru
      _
    %473 = vsyncpa [#allocation3], 1
    %474 = vsyncpa [#allocation6], 1
    %475 = vsyncpa [#allocation9], 1
    %476 = vsyncpa [#allocation4], 1
    %477 = vsyncpa [#allocation12], 1

</llo_original>
